<compile_context>
chip_gen: v7x
topology: tpu7x:2x2x1
jax: 0.10.0
libtpu: 0.0.40
codegen_flags: <defaults>
</compile_context>

<pallas_src>
import functools
import math
from typing import NamedTuple

import jax
import jax.numpy as jnp
from jax.experimental import pallas as pl
from jax.experimental.pallas import tpu as pltpu


class GMMPDF(NamedTuple):
    """JAX analogue of the PyTorch GMM_PDF returned by forward()."""
    means: jax.Array            # (B, G)
    stds: jax.Array             # (B, G)
    mixture_weights: jax.Array  # (B, G), rows sum to 1

    def evaluate_at(self, x):
        # Plain-JAX glue replicating GMM_PDF.evaluate_at for x of shape (B,).
        log_probs = (
            -0.5 * ((x[:, None] - self.means) / self.stds) ** 2
            - jnp.log(self.stds)
            - 0.5 * math.log(2.0 * math.pi)
        )
        return jnp.sum(jnp.exp(log_probs) * self.mixture_weights, axis=1)


# ----------------------------- Pallas kernels ------------------------------ #

def _gmm_head_kernel_uniform(x_ref, w_ref, b_ref, out_ref):
    """out = tanh(x @ W + b).

    x_ref:   (TB, D)   batch tile
    w_ref:   (D, GP)   means weights, zero-padded to lane-dense GP (mult of 128)
    b_ref:   (1, GP)
    out_ref: (TB, GP)  cols [0, G) hold tanh(means); rest is padding.
    """
    raw = jnp.dot(x_ref[...], w_ref[...],
                  preferred_element_type=jnp.float32) + b_ref[...]
    out_ref[...] = jnp.tanh(raw)


def _gmm_head_kernel_learned(x_ref, w_ref, b_ref, out_ref, *, num_gaussians):
    """Fused means + mixture-weights head, packed into one lane-dense slab.

    Fused operand layout (columns of W / b / out):
      [0, G)   : means linear layer      -> tanh
      [G, 2G)  : weights linear layer    -> softmax (over those G columns only)
      [2G, GP) : zero padding
    """
    g = num_gaussians
    raw = jnp.dot(x_ref[...], w_ref[...],
                  preferred_element_type=jnp.float32) + b_ref[...]

    lane = jax.lax.broadcasted_iota(jnp.int32, raw.shape, dimension=1)

    # --- means: tanh over the whole slab (only cols [0, G) are kept) ---
    means_part = jnp.tanh(raw)

    # --- mixture weights: masked softmax over cols [G, 2G) ---
    wmask = (lane >= g) & (lane < 2 * g)
    neg_inf = jnp.float32(-jnp.inf)
    masked = jnp.where(wmask, raw, neg_inf)
    m = jnp.max(masked, axis=-1, keepdims=True)            # finite (G real cols)
    e = jnp.exp(masked - m)                                 # 0 outside the mask
    denom = jnp.sum(e, axis=-1, keepdims=True)
    # approx=False keeps the 1e-5 agreement with the f32 reference.
    softmax_part = e * pl.reciprocal(denom, approx=False)

    out_ref[...] = jnp.where(lane < g, means_part, softmax_part)


# ------------------------------ wrapper/glue -------------------------------- #

def init_params(key, input_dim, num_gaussians, mixture_weights_learned=False):
    """Deterministic init matching the PyTorch module's parameter shapes."""
    k = 1.0 / math.sqrt(input_dim)
    keys = jax.random.split(key, 4)
    params = {
        "w_means": jax.random.uniform(keys[0], (num_gaussians, input_dim),
                                      jnp.float32, -k, k),
        "b_means": jax.random.uniform(keys[1], (num_gaussians,),
                                      jnp.float32, -k, k),
        "log_stds": jnp.full((num_gaussians,), math.log(2.0), dtype=jnp.float32),
    }
    if mixture_weights_learned:
        params["w_weights"] = jax.random.uniform(keys[2], (num_gaussians, input_dim),
                                                 jnp.float32, -k, k),
        # (note: uniform returns array; unpack tuple artifact avoided below)
        params["w_weights"] = params["w_weights"][0]
        params["b_weights"] = jax.random.uniform(keys[3], (num_gaussians,),
                                                 jnp.float32, -k, k)
    return params


def _round_up(v, m):
    return ((v + m - 1) // m) * m


def gmm_head_mle_forward(x, params, *, mixture_weights_learned=False,
                         block_batch=1024):
    """Pallas implementation of GMM_Head_MLE.forward (learn_stds=True)."""
    B, D = x.shape
    G = params["w_means"].shape[0]

    # ---------------- x-independent outputs: stay OUT of the kernel ---------
    std_row = jax.nn.softplus(params["log_stds"]).astype(jnp.float32)   # (G,)
    stds = jnp.broadcast_to(std_row[None, :], (B, G))

    # ---------------- lane-dense packed operand / output width --------------
    needed_cols = 2 * G if mixture_weights_learned else G
    GP = _round_up(max(needed_cols, 1), 128)                # multiple of 128

    w_fused = jnp.zeros((D, GP), dtype=jnp.float32)
    b_fused = jnp.zeros((1, GP), dtype=jnp.float32)
    w_fused = w_fused.at[:, :G].set(params["w_means"].T)
    b_fused = b_fused.at[:, :G].set(params["b_means"][None, :])
    if mixture_weights_learned:
        w_fused = w_fused.at[:, G:2 * G].set(params["w_weights"].T)
        b_fused = b_fused.at[:, G:2 * G].set(params["b_weights"][None, :])

    # ---------------- batch tiling -------------------------------------------
    block_batch = max(8, (block_batch // 8) * 8)            # keep multiple of 8
    if B <= block_batch:
        TB, B_pad = B, B                                    # full-dim block
    else:
        TB = block_batch
        B_pad = _round_up(B, TB)
    x_in = x.astype(jnp.float32)
    if B_pad != B:
        x_in = jnp.pad(x_in, ((0, B_pad - B), (0, 0)))
    num_tiles = B_pad // TB

    if mixture_weights_learned:
        kernel = functools.partial(_gmm_head_kernel_learned, num_gaussians=G)
    else:
        kernel = _gmm_head_kernel_uniform

    slab = pl.pallas_call(
        kernel,
        out_shape=jax.ShapeDtypeStruct((B_pad, GP), jnp.float32),
        grid=(num_tiles,),
        in_specs=[
            pl.BlockSpec((TB, D), lambda i: (i, 0)),        # x tile (pipelined)
            pl.BlockSpec((D, GP), lambda i: (0, 0)),        # weight-stationary
            pl.BlockSpec((1, GP), lambda i: (0, 0)),        # bias-stationary
        ],
        out_specs=pl.BlockSpec((TB, GP), lambda i: (i, 0)),  # lane-dense stores
        compiler_params=pltpu.CompilerParams(
            dimension_semantics=("parallel",)),              # megacore on v7x
    )(x_in, w_fused, b_fused)

    slab = slab[:B]
    means = slab[:, :G]
    if mixture_weights_learned:
        weights = slab[:, G:2 * G]
    else:
        weights = jnp.full((B, G), 1.0 / G, dtype=jnp.float32)

    return GMMPDF(means=means, stds=stds, mixture_weights=weights)


def _reference_forward(x, params, *, mixture_weights_learned=False):
    """Pure-JAX reference mirroring the PyTorch forward."""
    raw_means = x @ params["w_means"].T + params["b_means"]
    means = jnp.tanh(raw_means)
    stds = jnp.broadcast_to(jax.nn.softplus(params["log_stds"])[None, :], means.shape)
    if mixture_weights_learned:
        raw_w = x @ params["w_weights"].T + params["b_weights"]
        weights = jax.nn.softmax(raw_w, axis=-1)
    else:
        weights = jnp.full_like(means, 1.0 / means.shape[-1])
    return means, stds, weights


# TODO(synk): GMM_PDF.sample_from (Categorical sampling + reparameterized draws)
# is stochastic host-side behavior, not part of forward(); not implemented as a kernel.


if __name__ == "__main__":
    input_dim, num_gaussians = 32, 16

    key = jax.random.PRNGKey(0)
    kx, kp, kpw = jax.random.split(key, 3)

    ok = True
    # (batch, block_batch): second case forces a multi-tile grid (grid=(2,)).
    for batch_size, bb in ((8, 1024), (16, 8)):
        x = jax.random.normal(kx, (batch_size, input_dim), dtype=jnp.float32)
        for learned in (False, True):
            params = init_params(kp if not learned else kpw, input_dim,
                                 num_gaussians, mixture_weights_learned=learned)
            gmm = gmm_head_mle_forward(x, params,
                                       mixture_weights_learned=learned,
                                       block_batch=bb)
            jax.block_until_ready(gmm)

            ref_means, ref_stds, ref_w = _reference_forward(
                x, params, mixture_weights_learned=learned)
            ok &= bool(jnp.allclose(gmm.means, ref_means, atol=1e-5, rtol=1e-5))
            ok &= bool(jnp.allclose(gmm.stds, ref_stds, atol=1e-5, rtol=1e-5))
            ok &= bool(jnp.allclose(gmm.mixture_weights, ref_w, atol=1e-5, rtol=1e-5))

    if ok:
        print("KERNEL_OK")
    else:
        print("KERNEL_MISMATCH")
</pallas_src>

<mosaic_0001>
module attributes {stable_mosaic.version = 11 : i64} {
  func.func @_gmm_head_kernel_uniform(%arg0: i32, %arg1: memref<8x32xf32, #tpu.memory_space<vmem>>, %arg2: memref<32x128xf32, #tpu.memory_space<vmem>>, %arg3: memref<1x128xf32, #tpu.memory_space<vmem>>, %arg4: memref<8x128xf32, #tpu.memory_space<vmem>>) attributes {dimension_semantics = [#tpu.dimension_semantics<parallel>], iteration_bounds = array<i64: 1>, scalar_prefetch = 0 : i64, scratch_operands = 0 : i64, tpu.core_type = #tpu.core_type<tc>, window_params = [{transform_indices = @transform_0, window_bounds = array<i64: 8, 32>}, {pipeline_mode = #tpu.pipeline_mode<synchronous>, transform_indices = @transform_1, window_bounds = array<i64: 32, 128>}, {pipeline_mode = #tpu.pipeline_mode<synchronous>, transform_indices = @transform_2, window_bounds = array<i64: 1, 128>}, {transform_indices = @transform_3, window_bounds = array<i64: 8, 128>}]} {
    %c0 = arith.constant 0 : index
    %c0_0 = arith.constant 0 : index
    %0 = vector.load %arg1[%c0, %c0_0] : memref<8x32xf32, #tpu.memory_space<vmem>>, vector<8x32xf32>
    %c0_1 = arith.constant 0 : index
    %c0_2 = arith.constant 0 : index
    %1 = vector.load %arg2[%c0_1, %c0_2] : memref<32x128xf32, #tpu.memory_space<vmem>>, vector<32x128xf32>
    %cst = arith.constant dense<0.000000e+00> : vector<8x128xf32>
    %2 = tpu.matmul %0, %1, %cst {dimension_numbers = #tpu.dot_dimension_numbers<[1], [0], [0], [1], [0, 0, 1, 1], [], []>} : vector<8x32xf32>, vector<32x128xf32>, vector<8x128xf32> -> vector<8x128xf32>
    %c0_3 = arith.constant 0 : index
    %c0_4 = arith.constant 0 : index
    %3 = vector.load %arg3[%c0_3, %c0_4] : memref<1x128xf32, #tpu.memory_space<vmem>>, vector<1x128xf32>
    %4 = vector.broadcast %3 : vector<1x128xf32> to vector<8x128xf32>
    %5 = arith.addf %2, %4 : vector<8x128xf32>
    %6 = math.tanh %5 : vector<8x128xf32>
    %c0_5 = arith.constant 0 : index
    %c0_6 = arith.constant 0 : index
    %7 = vector.load %arg4[%c0_5, %c0_6] : memref<8x128xf32, #tpu.memory_space<vmem>>, vector<8x128xf32>
    tpu.vector_store %arg4[%c0_5, %c0_6], %6 {strides = array<i32>} : memref<8x128xf32, #tpu.memory_space<vmem>>, vector<8x128xf32>,
    return
  }
  func.func @transform_0(%arg0: i32) -> (i32, i32) {
    %c0_i32 = arith.constant 0 : i32
    %c0_i32_0 = arith.constant 0 : i32
    return %arg0, %c0_i32 : i32, i32
  }
  func.func @transform_1(%arg0: i32) -> (i32, i32) {
    %c0_i32 = arith.constant 0 : i32
    %c0_i32_0 = arith.constant 0 : i32
    %c0_i32_1 = arith.constant 0 : i32
    return %c0_i32, %c0_i32_0 : i32, i32
  }
  func.func @transform_2(%arg0: i32) -> (i32, i32) {
    %c0_i32 = arith.constant 0 : i32
    %c0_i32_0 = arith.constant 0 : i32
    %c0_i32_1 = arith.constant 0 : i32
    return %c0_i32, %c0_i32_0 : i32, i32
  }
  func.func @transform_3(%arg0: i32) -> (i32, i32) {
    %c0_i32 = arith.constant 0 : i32
    %c0_i32_0 = arith.constant 0 : i32
    return %arg0, %c0_i32 : i32, i32
  }
}

</mosaic_0001>

<llo_original>
// kernel: tpu_custom_call.1
$region0: #{tpu_custom_call.1}
  #allocation0 [shape = 'u32[]', space=smem, size = 0x4, offset = 0x4, fixed_abs, tag = 'smem constant byte address 0x4 - core index']
  #allocation1 [shape = 'u32[144,128]{1,0:T(1,128)}', space=vmem, size = 0x12000, scoped, tag = 'internal scratch']
  %s0 = inlined_call_operand.hbm [shape: f32[8,32], index: 0, kind: input, shape index: {}]
  %s1 = inlined_call_operand.hbm [shape: f32[32,128], index: 1, kind: input, shape index: {}]
  %s2 = inlined_call_operand.vmem [shape: f32[1,128], index: 2, kind: input, shape index: {}]
  %s3 = inlined_call_operand.hbm [shape: f32[8,128], index: 3, kind: output, shape index: {}]
  %s4 = sld [smem:[#allocation0]]
  $region30: #{tpu_custom_call.1} parent=0
    _
  %s6 = ssub.s32 1, %s4
  %s7 = scalar_select 0, %s6, %s4
  $region1: #{tpu_custom_call.1} parent=0
    #allocation2 [shape = 'u8[4096]{0}', space=vmem, size = 0x1000, scoped, tag = 'input window, operand 0, single buffered']
    #allocation3 [shape = 's32[1]{0}', space=sflag, size = 0x4, scoped, tag = 'scoped memory for tpu_custom_call.1']
    #allocation4 [shape = 's32[1]{0}', space=sflag, size = 0x4, scoped, tag = 'scoped memory for tpu_custom_call.1']
    #allocation5 [shape = 'u8[16384]{0}', space=vmem, size = 0x4000, scoped, tag = 'input window, operand 1, single buffered']
    #allocation6 [shape = 's32[1]{0}', space=sflag, size = 0x4, scoped, tag = 'scoped memory for tpu_custom_call.1']
    #allocation7 [shape = 'u8[4096]{0}', space=vmem, size = 0x1000, scoped, tag = 'output window, operand 0, single buffered']
    %8 = vsyncpa [#allocation3], 0
    %9 = vsyncpa [#allocation6], 0
    %10 = vsyncpa [#allocation4], 0
    // Predicated region
    $region2: #{tpu_custom_call.1} parent=1 // pred_check
      _
    $region3: #{tpu_custom_call.1} parent=1 // pred_check_branch
      %12 = sbr.rel (0) target = $region5
    $region4: #{tpu_custom_call.1} parent=1 // pred_region
      %s14 = ssub.s32 128, 128
      %15 = vsyncadd [#allocation3], %s14
      %s17 = sshll.u32 [#allocation2], 4
      %s18 = int_to_ptr.vmem [resolvable:$true] %s17
      %20 = dma.hbm_to_vmem [thread:$0]  %s0, 128, %s18, [#allocation3]
    $region5: #{tpu_custom_call.1} parent=1 // pred_fallthru
      _
    // Predicated region
    $region6: #{tpu_custom_call.1} parent=1 // pred_check
      _
    $region7: #{tpu_custom_call.1} parent=1 // pred_check_branch
      %22 = sbr.rel (0) target = $region9
    $region8: #{tpu_custom_call.1} parent=1 // pred_region
      %s24 = ssub.s32 512, 512
      %25 = vsyncadd [#allocation6], %s24
      %s26 = sshll.u32 [#allocation5], 4
      %s27 = int_to_ptr.vmem [resolvable:$true] %s26
      %32 = dma.hbm_to_vmem [thread:$0]  %s1, 512, %s27, [#allocation6], 128, 128, 8
    $region9: #{tpu_custom_call.1} parent=1 // pred_fallthru
      _
    // Predicated region
    $region10: #{tpu_custom_call.1} parent=1 // pred_check
      _
    $region11: #{tpu_custom_call.1} parent=1 // pred_check_branch
      %34 = sbr.rel (0) target = $region13
    $region12: #{tpu_custom_call.1} parent=1 // pred_region
      _
    $region13: #{tpu_custom_call.1} parent=1 // pred_fallthru
      _
    // Predicated region
    $region14: #{tpu_custom_call.1} parent=1 // pred_check
      _
    $region15: #{tpu_custom_call.1} parent=1 // pred_check_branch
      %36 = sbr.rel (0) target = $region17
    $region16: #{tpu_custom_call.1} parent=1 // pred_region
      %37 = dma.done [#allocation3], 128
    $region17: #{tpu_custom_call.1} parent=1 // pred_fallthru
      _
    // Predicated region
    $region18: #{tpu_custom_call.1} parent=1 // pred_check
      _
    $region19: #{tpu_custom_call.1} parent=1 // pred_check_branch
      %39 = sbr.rel (0) target = $region21
    $region20: #{tpu_custom_call.1} parent=1 // pred_region
      %40 = dma.done [#allocation6], 512
    $region21: #{tpu_custom_call.1} parent=1 // pred_fallthru
      _
    %v41 = vld [vmem:[#allocation2] sm:$0xff]
    %v42 = vld [vmem:[#allocation5] sm:$0xff]
    %v43 = vld [vmem:[#allocation5 + $0x8] sm:$0xff]
    %v44 = vld [vmem:[#allocation5 + $0x10] sm:$0xff]
    %v45 = vld [vmem:[#allocation5 + $0x18] sm:$0xff]
    %v46 = vld [vmem:[%s2] sm:$0x1]
    %v48 = vlaneseq
    %v49 = vshrl.u32 %v48, 7
    %v50 = vsub.s32 0, %v49
    %v51 = vrot.slane %v46, %v50
    %vm53 = vcmask 261120
    %v55 = vsel %vm53, %v41, 0
    %57 = vmatprep.subr.mxu0 0.0
    %58 = vmatpush1.msra.mxu0 %v42
    %59 = vmatprep.subr.mxu0 0.0
    %60 = vmatpush1.msra.mxu0 %v43
    %61 = vmatprep.subr.mxu0 0.0
    %62 = vmatpush1.msra.mxu0 %v44
    %63 = vmatprep.subr.mxu0 0.0
    %64 = vmatpush1.msra.mxu0 %v45
    %65 = vmatprep.subr.mxu0 0.0
    %66 = vmatpush1.msra.mxu0 0.0
    %67 = vmatprep.subr.mxu0 0.0
    %68 = vmatpush1.msra.mxu0 0.0
    %69 = vmatprep.subr.mxu0 0.0
    %70 = vmatpush1.msra.mxu0 0.0
    %71 = vmatprep.subr.mxu0 0.0
    %72 = vmatpush1.msra.mxu0 0.0
    %73 = vmatprep.subr.mxu0 0.0
    %74 = vmatpush1.msra.mxu0 0.0
    %75 = vmatprep.subr.mxu0 0.0
    %76 = vmatpush1.msra.mxu0 0.0
    %77 = vmatprep.subr.mxu0 0.0
    %78 = vmatpush1.msra.mxu0 0.0
    %79 = vmatprep.subr.mxu0 0.0
    %80 = vmatpush1.msra.mxu0 0.0
    %81 = vmatprep.subr.mxu0 0.0
    %82 = vmatpush1.msra.mxu0 0.0
    %83 = vmatprep.subr.mxu0 0.0
    %84 = vmatpush1.msra.mxu0 0.0
    %85 = vmatprep.subr.mxu0 0.0
    %86 = vmatpush1.msra.mxu0 0.0
    %87 = vmatprep.subr.mxu0 0.0
    %88 = vmatpush1.msra.mxu0 0.0
    %89 = vmatprep.subr.mxu0 0.0
    %90 = vmatpush1.msra.mxu0 0.0
    %91 = vmatprep.subr.mxu0 0.0
    %92 = vmatpush1.msra.mxu0 0.0
    %93 = vmatprep.subr.mxu0 0.0
    %94 = vmatpush1.msra.mxu0 0.0
    %95 = vmatprep.subr.mxu0 0.0
    %96 = vmatpush1.msra.mxu0 0.0
    %97 = vmatprep.subr.mxu0 0.0
    %98 = vmatpush1.msra.mxu0 0.0
    %99 = vmatprep.subr.mxu0 0.0
    %100 = vmatpush1.msra.mxu0 0.0
    %101 = vmatprep.subr.mxu0 0.0
    %102 = vmatpush1.msra.mxu0 0.0
    %103 = vmatprep.subr.mxu0 0.0
    %104 = vmatpush1.msra.mxu0 0.0
    %105 = vmatprep.subr.mxu0 0.0
    %106 = vmatpush1.msra.mxu0 0.0
    %107 = vmatprep.subr.mxu0 0.0
    %108 = vmatpush1.msra.mxu0 0.0
    %109 = vmatprep.subr.mxu0 0.0
    %110 = vmatpush1.msra.mxu0 0.0
    %111 = vmatprep.subr.mxu0 0.0
    %112 = vmatpush1.msra.mxu0 0.0
    %113 = vmatprep.subr.mxu0 0.0
    %114 = vmatpush1.msra.mxu0 0.0
    %115 = vmatprep.subr.mxu0 0.0
    %116 = vmatpush1.msra.mxu0 0.0
    %117 = vmatprep.subr.mxu0 0.0
    %118 = vmatpush1.msra.mxu0 0.0
    %119 = vmatprep.subr.mxu0 0.0
    %120 = vmatpush1.msra.mxu0 0.0
    %121 = vmatprep.mubr.f32.mxu0 0.0
    %122 = vmatmul.mubr.f32.gmra.mrb[0].mxu0 %v55
    %v123 = vpop.f32.mrb[0].mxu0
    %v124 = vadd.f32 %v51, %v123
    %v125 = vpop.f32.mrb[0].mxu0
    %126 = vdwg.mxu0
    %v127 = vtanh.pop %v124
    %128 = vst [vmem:[#allocation7] sm:$0xff] %v127
    // Predicated region
    $region22: #{tpu_custom_call.1} parent=1 // pred_check
      _
    $region23: #{tpu_custom_call.1} parent=1 // pred_check_branch
      %130 = sbr.rel (0) target = $region25
    $region24: #{tpu_custom_call.1} parent=1 // pred_region
      %s132 = ssub.s32 128, 128
      %133 = vsyncadd [#allocation4], %s132
      %s135 = sshll.u32 [#allocation7], 4
      %s136 = int_to_ptr.vmem [resolvable:$true] %s135
      %138 = dma.vmem_to_hbm [thread:$0]  %s136, 128, %s3, [#allocation4]
    $region25: #{tpu_custom_call.1} parent=1 // pred_fallthru
      _
    // Predicated region
    $region26: #{tpu_custom_call.1} parent=1 // pred_check
      _
    $region27: #{tpu_custom_call.1} parent=1 // pred_check_branch
      %140 = sbr.rel (0) target = $region29
    $region28: #{tpu_custom_call.1} parent=1 // pred_region
      %141 = dma.done [#allocation4], 128
    $region29: #{tpu_custom_call.1} parent=1 // pred_fallthru
      _
    %142 = vsyncpa [#allocation3], 1
    %143 = vsyncpa [#allocation6], 1
    %144 = vsyncpa [#allocation4], 1

</llo_original>
